<compile_context>
chip_gen: v7x
topology: tpu7x:2x2x1
jax: 0.10.0
libtpu: 0.0.40
codegen_flags: <defaults>
</compile_context>

<pallas_src>
import functools
import numpy as np

import jax
import jax.numpy as jnp
from jax import lax
from jax.experimental import pallas as pl
from jax.experimental.pallas import tpu as pltpu


def _round_up(x, m):
    return ((x + m - 1) // m) * m


def _pick_tile(size, candidates):
    for c in candidates:
        if size % c == 0:
            return c
    return size


# ----------------------------------------------------------------------------
# Pallas kernel: fused L1-cdist + softmax + class gather + weighted sum
# ----------------------------------------------------------------------------
def _matcher_cost_kernel(out_nodes_ref, tgt_nodes_t_ref, logits_ref, tgt_ids_ref,
                         c_ref, *, cost_nodes_w, cost_class_w):
    out_nodes = out_nodes_ref[0]      # (tile_n, 3)   f32
    tgt_t = tgt_nodes_t_ref[0]        # (3, tile_m)   f32
    logits = logits_ref[0]            # (tile_n, K)   f32
    ids = tgt_ids_ref[0]              # (1, tile_m)   int32 (padded cols = -1)

    k = logits.shape[-1]
    tile_m = tgt_t.shape[-1]

    # torch.cdist(p=1): sum_d |out[:, d] - tgt[:, d]| -> (tile_n, tile_m)
    # d=0 term initializes the accumulator (no zero-fill), d=1..2 accumulate.
    cost_nodes = jnp.abs(out_nodes[:, 0:1] - tgt_t[0:1, :])
    for d in range(1, 3):
        cost_nodes = cost_nodes + jnp.abs(out_nodes[:, d:d + 1] - tgt_t[d:d + 1, :])

    # Numerically stable softmax over the class axis (matches torch.softmax).
    mx = jnp.max(logits, axis=-1, keepdims=True)
    ex = jnp.exp(logits - mx)
    probs = ex / jnp.sum(ex, axis=-1, keepdims=True)       # (tile_n, K)

    # probs[:, tgt_ids] gather. Padded columns (ids == -1) gather 0.
    if k <= 8:
        # Tiny class count: pure VPU select/broadcast, skip the MXU.
        gathered = probs[:, 0:1] * (ids == 0).astype(jnp.float32)
        for kk in range(1, k):
            gathered = gathered + probs[:, kk:kk + 1] * (ids == kk).astype(jnp.float32)
    else:
        # General case: one-hot built in-kernel (no K*M HBM one-hot), MXU matmul.
        iota_k = lax.broadcasted_iota(jnp.int32, (k, tile_m), 0)
        onehot = (iota_k == ids).astype(jnp.float32)        # (K, tile_m)
        gathered = jnp.dot(probs, onehot, preferred_element_type=jnp.float32)

    c_ref[0] = cost_nodes_w * cost_nodes - cost_class_w * gathered


# ----------------------------------------------------------------------------
# Jitted wrapper: per-batch block-diagonal cost blocks
# ----------------------------------------------------------------------------
@functools.partial(jax.jit, static_argnames=("cost_nodes_w", "cost_class_w"))
def matcher_cost_blocks(pred_nodes, pred_logits, tgt_nodes_t, tgt_ids,
                        *, cost_nodes_w, cost_class_w):
    """Returns (bs, nq_pad, m_pad) f32 per-batch cost blocks.

    pred_nodes:  (bs, nq, >=3)
    pred_logits: (bs, nq, K)
    tgt_nodes_t: (bs, 3, m_pad)  zero-padded targets, transposed (lane-dense M)
    tgt_ids:     (bs, 1, m_pad)  int32 class ids; padded entries are -1

    Rows >= nq and padded target columns are junk and must be sliced off.
    """
    bs, nq = pred_nodes.shape[:2]
    num_classes = pred_logits.shape[-1]
    m_pad = tgt_nodes_t.shape[-1]

    nq_pad = _round_up(nq, 8)
    tile_n = _pick_tile(nq_pad, (256, 128, 64, 32, 16, 8))
    tile_m = _pick_tile(m_pad, (512, 384, 256, 128))

    out_nodes = pred_nodes[..., :3].astype(jnp.float32)
    logits = pred_logits.astype(jnp.float32)
    if nq_pad != nq:
        out_nodes = jnp.pad(out_nodes, ((0, 0), (0, nq_pad - nq), (0, 0)))
        logits = jnp.pad(logits, ((0, 0), (0, nq_pad - nq), (0, 0)))

    kernel = functools.partial(_matcher_cost_kernel,
                               cost_nodes_w=float(cost_nodes_w),
                               cost_class_w=float(cost_class_w))

    grid = (bs, nq_pad // tile_n, m_pad // tile_m)
    c = pl.pallas_call(
        kernel,
        out_shape=jax.ShapeDtypeStruct((bs, nq_pad, m_pad), jnp.float32),
        grid_spec=pltpu.PrefetchScalarGridSpec(
            num_scalar_prefetch=0,
            grid=grid,
            in_specs=[
                pl.BlockSpec((1, tile_n, 3), lambda b, i, j: (b, i, 0)),
                pl.BlockSpec((1, 3, tile_m), lambda b, i, j: (b, 0, j)),
                pl.BlockSpec((1, tile_n, num_classes), lambda b, i, j: (b, i, 0)),
                pl.BlockSpec((1, 1, tile_m), lambda b, i, j: (b, 0, j)),
            ],
            out_specs=pl.BlockSpec((1, tile_n, tile_m), lambda b, i, j: (b, i, j)),
        ),
        compiler_params=pltpu.CompilerParams(
            dimension_semantics=("parallel", "parallel", "parallel")),
    )(out_nodes, tgt_nodes_t, logits, tgt_ids)
    return c


# ----------------------------------------------------------------------------
# Host-side target packing + Hungarian assignment
# ----------------------------------------------------------------------------
def _pack_targets(node_list, bs):
    """Pack ragged per-batch targets into padded, lane-dense arrays."""
    sizes = [int(v.shape[0]) for v in node_list]
    m_pad = _round_up(max(max(sizes), 1), 128)
    tgt_nodes_pad = np.zeros((bs, m_pad, 3), np.float32)
    tgt_ids_pad = np.full((bs, 1, m_pad), -1, np.int32)
    for b, v in enumerate(node_list):
        if sizes[b] > 0:
            tgt_nodes_pad[b, :sizes[b], :] = np.asarray(v[:, :3], dtype=np.float32)
            tgt_ids_pad[b, 0, :sizes[b]] = 1   # spec: every target has class id 1
    tgt_nodes_t = jnp.asarray(np.transpose(tgt_nodes_pad, (0, 2, 1)))  # (bs, 3, m_pad)
    tgt_ids = jnp.asarray(tgt_ids_pad)                                 # (bs, 1, m_pad)
    return tgt_nodes_t, tgt_ids, sizes


def _linear_sum_assignment(cost):
    # TODO(synk): linear_sum_assignment is a sequential combinatorial solver;
    # kept on host (scipy if present, exact brute force fallback for tiny sizes).
    try:
        from scipy.optimize import linear_sum_assignment as lsa
        return lsa(cost)
    except Exception:
        import itertools
        n_rows, n_cols = cost.shape
        assert n_rows >= n_cols and n_rows <= 10, "brute force only for tiny demos"
        best_perm, best_cost = None, np.inf
        for perm in itertools.permutations(range(n_rows), n_cols):
            c = cost[list(perm), range(n_cols)].sum()
            if c < best_cost:
                best_cost, best_perm = c, perm
        rows = np.asarray(best_perm)
        cols = np.arange(n_cols)
        order = np.argsort(rows)
        return rows[order], cols[order]


class HungarianMatcherPallas:
    """JAX/Pallas port of HungarianMatcher.forward (class id hard-coded to 1, as in spec)."""

    def __init__(self, cost_class=3.0, cost_nodes=5.0):
        self.cost_class = float(cost_class)
        self.cost_nodes = float(cost_nodes)

    def __call__(self, outputs, targets):
        pred_nodes = outputs['pred_nodes']        # (bs, num_queries, >=3)
        pred_logits = outputs['pred_logits']      # (bs, num_queries, num_classes)
        bs, num_queries = pred_nodes.shape[:2]

        tgt_nodes_t, tgt_ids, sizes = _pack_targets(targets['nodes'], bs)

        c = matcher_cost_blocks(pred_nodes, pred_logits, tgt_nodes_t, tgt_ids,
                                cost_nodes_w=self.cost_nodes,
                                cost_class_w=self.cost_class)
        c_np = np.asarray(jax.block_until_ready(c))   # (bs, nq_pad, m_pad)

        indices = []
        for b, sz in enumerate(sizes):
            sub = c_np[b, :num_queries, :sz]          # slice off row/col padding
            r, col = _linear_sum_assignment(sub)
            indices.append((np.asarray(r, dtype=np.int64),
                            np.asarray(col, dtype=np.int64)))
        return indices


# ----------------------------------------------------------------------------
# Demo / self-test
# ----------------------------------------------------------------------------
if __name__ == "__main__":
    key = jax.random.PRNGKey(0)
    bs, num_queries, num_classes = 2, 8, 2
    tgt_sizes = [5, 7]

    k1, k2, k3 = jax.random.split(key, 3)
    pred_nodes = jax.random.uniform(k1, (bs, num_queries, 3), dtype=jnp.float32)
    pred_logits = jax.random.normal(k2, (bs, num_queries, num_classes),
                                    dtype=jnp.float32)
    tkeys = jax.random.split(k3, len(tgt_sizes))
    target_nodes = [jax.random.uniform(tk, (s, 3), dtype=jnp.float32)
                    for tk, s in zip(tkeys, tgt_sizes)]

    matcher = HungarianMatcherPallas(cost_class=3.0, cost_nodes=5.0)
    outputs = {'pred_nodes': pred_nodes, 'pred_logits': pred_logits}
    targets = {'nodes': target_nodes}

    indices = matcher(outputs, targets)
    assert len(indices) == bs
    for (r, col), sz in zip(indices, tgt_sizes):
        assert r.shape == (sz,) and col.shape == (sz,)

    # Pure-JAX reference for the cost matrix (validates the Pallas kernel).
    out_nodes_flat = pred_nodes[..., :3].reshape(-1, 3)
    tgt_nodes_cat = jnp.concatenate([v[:, :3] for v in target_nodes], axis=0)
    tgt_ids_cat = jnp.concatenate(
        [jnp.ones((v.shape[0],), jnp.int32) for v in target_nodes])
    cost_nodes_ref = jnp.sum(
        jnp.abs(out_nodes_flat[:, None, :] - tgt_nodes_cat[None, :, :]), axis=-1)
    probs_ref = jax.nn.softmax(pred_logits.reshape(-1, num_classes), axis=-1)
    cost_class_ref = -probs_ref[:, tgt_ids_cat]
    c_ref_full = (5.0 * cost_nodes_ref + 3.0 * cost_class_ref).reshape(
        bs, num_queries, -1)

    # Kernel output: per-batch block-diagonal blocks (padded rows/cols sliced).
    tgt_nodes_t, tgt_ids, sizes = _pack_targets(target_nodes, bs)
    c_blocks = matcher_cost_blocks(pred_nodes, pred_logits, tgt_nodes_t, tgt_ids,
                                   cost_nodes_w=5.0, cost_class_w=3.0)
    c_blocks = np.asarray(jax.block_until_ready(c_blocks))
    c_ref_np = np.asarray(c_ref_full)

    col_start = 0
    for b, sz in enumerate(sizes):
        np.testing.assert_allclose(
            c_blocks[b, :num_queries, :sz],
            c_ref_np[b, :, col_start:col_start + sz],
            rtol=1e-5, atol=1e-5)
        col_start += sz

    print("KERNEL_OK")
</pallas_src>

<mosaic_0001>
module attributes {stable_mosaic.version = 11 : i64} {
  func.func @_matcher_cost_kernel(%arg0: i32, %arg1: i32, %arg2: i32, %arg3: memref<1x8x3xf32, #tpu.memory_space<vmem>>, %arg4: memref<1x3x128xf32, #tpu.memory_space<vmem>>, %arg5: memref<1x8x2xf32, #tpu.memory_space<vmem>>, %arg6: memref<1x1x128xi32, #tpu.memory_space<vmem>>, %arg7: memref<1x8x128xf32, #tpu.memory_space<vmem>>) attributes {dimension_semantics = [#tpu.dimension_semantics<parallel>, #tpu.dimension_semantics<parallel>, #tpu.dimension_semantics<parallel>], iteration_bounds = array<i64: 2, 1, 1>, scalar_prefetch = 0 : i64, scratch_operands = 0 : i64, tpu.core_type = #tpu.core_type<tc>, window_params = [{transform_indices = @transform_0, window_bounds = array<i64: 1, 8, 3>}, {transform_indices = @transform_1, window_bounds = array<i64: 1, 3, 128>}, {transform_indices = @transform_2, window_bounds = array<i64: 1, 8, 2>}, {transform_indices = @transform_3, window_bounds = array<i64: 1, 1, 128>}, {transform_indices = @transform_4, window_bounds = array<i64: 1, 8, 128>}]} {
    %c0 = arith.constant 0 : index
    %c0_0 = arith.constant 0 : index
    %c0_1 = arith.constant 0 : index
    %0 = vector.load %arg3[%c0, %c0_0, %c0_1] : memref<1x8x3xf32, #tpu.memory_space<vmem>>, vector<1x8x3xf32>
    %1 = vector.shape_cast %0 : vector<1x8x3xf32> to vector<8x3xf32>
    %c0_2 = arith.constant 0 : index
    %c0_3 = arith.constant 0 : index
    %c0_4 = arith.constant 0 : index
    %2 = vector.load %arg4[%c0_2, %c0_3, %c0_4] : memref<1x3x128xf32, #tpu.memory_space<vmem>>, vector<1x3x128xf32>
    %3 = vector.shape_cast %2 : vector<1x3x128xf32> to vector<3x128xf32>
    %c0_5 = arith.constant 0 : index
    %c0_6 = arith.constant 0 : index
    %c0_7 = arith.constant 0 : index
    %4 = vector.load %arg5[%c0_5, %c0_6, %c0_7] : memref<1x8x2xf32, #tpu.memory_space<vmem>>, vector<1x8x2xf32>
    %5 = vector.shape_cast %4 : vector<1x8x2xf32> to vector<8x2xf32>
    %c0_8 = arith.constant 0 : index
    %c0_9 = arith.constant 0 : index
    %c0_10 = arith.constant 0 : index
    %6 = vector.load %arg6[%c0_8, %c0_9, %c0_10] : memref<1x1x128xi32, #tpu.memory_space<vmem>>, vector<1x1x128xi32>
    %7 = vector.shape_cast %6 : vector<1x1x128xi32> to vector<1x128xi32>
    %8 = vector.extract_strided_slice %1 {offsets = [0, 0], sizes = [8, 1], strides = [1, 1]} : vector<8x3xf32> to vector<8x1xf32>
    %9 = vector.extract_strided_slice %3 {offsets = [0, 0], sizes = [1, 128], strides = [1, 1]} : vector<3x128xf32> to vector<1x128xf32>
    %10 = vector.broadcast %8 : vector<8x1xf32> to vector<8x128xf32>
    %11 = vector.broadcast %9 : vector<1x128xf32> to vector<8x128xf32>
    %12 = arith.subf %10, %11 : vector<8x128xf32>
    %13 = math.absf %12 : vector<8x128xf32>
    %14 = vector.extract_strided_slice %1 {offsets = [0, 1], sizes = [8, 1], strides = [1, 1]} : vector<8x3xf32> to vector<8x1xf32>
    %15 = vector.extract_strided_slice %3 {offsets = [1, 0], sizes = [1, 128], strides = [1, 1]} : vector<3x128xf32> to vector<1x128xf32>
    %16 = vector.broadcast %14 : vector<8x1xf32> to vector<8x128xf32>
    %17 = vector.broadcast %15 : vector<1x128xf32> to vector<8x128xf32>
    %18 = arith.subf %16, %17 : vector<8x128xf32>
    %19 = math.absf %18 : vector<8x128xf32>
    %20 = arith.addf %13, %19 : vector<8x128xf32>
    %21 = vector.extract_strided_slice %1 {offsets = [0, 2], sizes = [8, 1], strides = [1, 1]} : vector<8x3xf32> to vector<8x1xf32>
    %22 = vector.extract_strided_slice %3 {offsets = [2, 0], sizes = [1, 128], strides = [1, 1]} : vector<3x128xf32> to vector<1x128xf32>
    %23 = vector.broadcast %21 : vector<8x1xf32> to vector<8x128xf32>
    %24 = vector.broadcast %22 : vector<1x128xf32> to vector<8x128xf32>
    %25 = arith.subf %23, %24 : vector<8x128xf32>
    %26 = math.absf %25 : vector<8x128xf32>
    %27 = arith.addf %20, %26 : vector<8x128xf32>
    %cst = arith.constant dense<0xFF800000> : vector<8xf32>
    %28 = vector.multi_reduction <maximumf>, %5, %cst [1] : vector<8x2xf32> to vector<8xf32>
    %29 = vector.shape_cast %28 : vector<8xf32> to vector<8x1xf32>
    %30 = vector.broadcast %29 : vector<8x1xf32> to vector<8x2xf32>
    %31 = arith.subf %5, %30 : vector<8x2xf32>
    %32 = math.exp %31 : vector<8x2xf32>
    %cst_11 = arith.constant dense<0.000000e+00> : vector<8xf32>
    %33 = vector.multi_reduction <add>, %32, %cst_11 [1] : vector<8x2xf32> to vector<8xf32>
    %34 = vector.shape_cast %33 : vector<8xf32> to vector<8x1xf32>
    %35 = vector.broadcast %34 : vector<8x1xf32> to vector<8x2xf32>
    %36 = arith.divf %32, %35 : vector<8x2xf32>
    %37 = vector.extract_strided_slice %36 {offsets = [0, 0], sizes = [8, 1], strides = [1, 1]} : vector<8x2xf32> to vector<8x1xf32>
    %c0_i32 = arith.constant 0 : i32
    %38 = vector.broadcast %c0_i32 : i32 to vector<1x128xi32>
    %39 = arith.cmpi eq, %7, %38 : vector<1x128xi32>
    %40 = arith.extui %39 : vector<1x128xi1> to vector<1x128xi32>
    %41 = arith.sitofp %40 : vector<1x128xi32> to vector<1x128xf32>
    %42 = vector.broadcast %37 : vector<8x1xf32> to vector<8x128xf32>
    %43 = vector.broadcast %41 : vector<1x128xf32> to vector<8x128xf32>
    %44 = arith.mulf %42, %43 : vector<8x128xf32>
    %45 = vector.extract_strided_slice %36 {offsets = [0, 1], sizes = [8, 1], strides = [1, 1]} : vector<8x2xf32> to vector<8x1xf32>
    %c1_i32 = arith.constant 1 : i32
    %46 = vector.broadcast %c1_i32 : i32 to vector<1x128xi32>
    %47 = arith.cmpi eq, %7, %46 : vector<1x128xi32>
    %48 = arith.extui %47 : vector<1x128xi1> to vector<1x128xi32>
    %49 = arith.sitofp %48 : vector<1x128xi32> to vector<1x128xf32>
    %50 = vector.broadcast %45 : vector<8x1xf32> to vector<8x128xf32>
    %51 = vector.broadcast %49 : vector<1x128xf32> to vector<8x128xf32>
    %52 = arith.mulf %50, %51 : vector<8x128xf32>
    %53 = arith.addf %44, %52 : vector<8x128xf32>
    %cst_12 = arith.constant 5.000000e+00 : f32
    %54 = vector.broadcast %cst_12 : f32 to vector<8x128xf32>
    %55 = arith.mulf %54, %27 : vector<8x128xf32>
    %cst_13 = arith.constant 3.000000e+00 : f32
    %56 = vector.broadcast %cst_13 : f32 to vector<8x128xf32>
    %57 = arith.mulf %56, %53 : vector<8x128xf32>
    %58 = arith.subf %55, %57 : vector<8x128xf32>
    %c0_14 = arith.constant 0 : index
    %c0_15 = arith.constant 0 : index
    %c0_16 = arith.constant 0 : index
    %59 = vector.load %arg7[%c0_14, %c0_15, %c0_16] : memref<1x8x128xf32, #tpu.memory_space<vmem>>, vector<1x8x128xf32>
    %60 = vector.shape_cast %59 : vector<1x8x128xf32> to vector<8x128xf32>
    %61 = vector.shape_cast %58 : vector<8x128xf32> to vector<1x8x128xf32>
    tpu.vector_store %arg7[%c0_14, %c0_15, %c0_16], %61 {strides = array<i32>} : memref<1x8x128xf32, #tpu.memory_space<vmem>>, vector<1x8x128xf32>,
    return
  }
  func.func @transform_0(%arg0: i32, %arg1: i32, %arg2: i32) -> (i32, i32, i32) {
    %c0_i32 = arith.constant 0 : i32
    %c0_i32_0 = arith.constant 0 : i32
    return %arg0, %arg1, %c0_i32 : i32, i32, i32
  }
  func.func @transform_1(%arg0: i32, %arg1: i32, %arg2: i32) -> (i32, i32, i32) {
    %c0_i32 = arith.constant 0 : i32
    %c0_i32_0 = arith.constant 0 : i32
    return %arg0, %c0_i32, %arg2 : i32, i32, i32
  }
  func.func @transform_2(%arg0: i32, %arg1: i32, %arg2: i32) -> (i32, i32, i32) {
    %c0_i32 = arith.constant 0 : i32
    %c0_i32_0 = arith.constant 0 : i32
    return %arg0, %arg1, %c0_i32 : i32, i32, i32
  }
  func.func @transform_3(%arg0: i32, %arg1: i32, %arg2: i32) -> (i32, i32, i32) {
    %c0_i32 = arith.constant 0 : i32
    %c0_i32_0 = arith.constant 0 : i32
    return %arg0, %c0_i32, %arg2 : i32, i32, i32
  }
  func.func @transform_4(%arg0: i32, %arg1: i32, %arg2: i32) -> (i32, i32, i32) {
    %c0_i32 = arith.constant 0 : i32
    return %arg0, %arg1, %arg2 : i32, i32, i32
  }
}

</mosaic_0001>

<llo_original>
// kernel: matcher_cost_blocks.1
$region0: #{matcher_cost_blocks.1}
  #allocation0 [shape = 'u32[]', space=smem, size = 0x4, offset = 0x4, fixed_abs, tag = 'smem constant byte address 0x4 - core index']
  #allocation1 [shape = 'u32[144,128]{1,0:T(1,128)}', space=vmem, size = 0x12000, scoped, tag = 'internal scratch']
  %s0 = inlined_call_operand.vmem [shape: f32[2,8,3], index: 0, kind: input, shape index: {}]
  %s1 = inlined_call_operand.vmem [shape: f32[2,3,128], index: 1, kind: input, shape index: {}]
  %s2 = inlined_call_operand.vmem [shape: f32[2,8,2], index: 2, kind: input, shape index: {}]
  %s3 = inlined_call_operand.vmem [shape: s32[2,1,128], index: 3, kind: input, shape index: {}]
  %s4 = inlined_call_operand.hbm [shape: f32[2,8,128], index: 4, kind: output, shape index: {}]
  %s5 = sld [smem:[#allocation0]]
  $region49: #{matcher_cost_blocks.1} parent=0
    _
  %s7 = ssub.s32 1, %s5
  %s8 = scalar_select 0, %s7, %s5
  $region1: #{matcher_cost_blocks.1} parent=0
    #allocation2 [shape = 'u8[8192]{0}', space=vmem, size = 0x2000, scoped, tag = 'output window, operand 0']
    #allocation3 [shape = 's32[2]{0}', space=sflag, size = 0x8, scoped, tag = 'scoped memory for matcher_cost_blocks.1']
    %9 = vsyncpa [#allocation3], 0
    %s10 = scalar_lea.sflag [#allocation3], 1
    %11 = vsyncpa %s10, 0
    loop: start=0, step=1, limit=4
    $region2: #{matcher_cost_blocks.1} parent=1 // loop_pre_header
      _
    $region3: #{matcher_cost_blocks.1} parent=1 // loop_header
      %s13 = sphi 0, %s17
      %p14 = scmp.ge.s32.totalorder %s13, 4
      %s20 = sphi 0, %s39
      %s21 = sphi 0, %s35
      %s22 = sphi 0, %s31
      %s23 = sphi 0, %s20
      %s24 = sphi 0, %s21
      %s25 = sphi 0, %s22
      %s26 = sphi 0, %s23
      %s27 = sphi 0, %s24
      %s28 = sphi 0, %s25
      %s44 = sphi 0, %s46
      %s47 = sphi 0, %s44
      %s48 = sphi 0, %s47
      %s64 = sphi 0, %s48
      %s72 = sphi 0, %s74
      %s75 = sphi 0, %s72
      %s76 = sphi 0, %s75
      %s92 = sphi 0, %s76
      %s100 = sphi 0, %s102
      %s103 = sphi 0, %s100
      %s104 = sphi 0, %s103
      %s120 = sphi 0, %s104
      %s128 = sphi 0, %s130
      %s131 = sphi 0, %s128
      %s132 = sphi 0, %s131
      %s148 = sphi 0, %s132
      %s158 = sphi 0, %s160
      %s161 = sphi 0, %s158
      %s162 = sphi 0, %s161
      %s178 = sphi 0, %s162
    $region4: #{matcher_cost_blocks.1} parent=1 // loop_header_branch
      %16 = sbr.rel (%p14) target = $region8
    $region5: #{matcher_cost_blocks.1} parent=1 // loop_body
      %s18 = ssub.s32 %s13, 1
      %s19 = ssub.s32 %s13, 2
      %s29 = sadd.s32 1, %s22
      %p30 = scmp.ge.s32.totalorder %s29, 1
      %s31 = scalar_select %p30, 0, %s29
      %s32 = sadd.s32 1, %s21
      %s33 = scalar_select %p30, %s32, %s21
      %p34 = scmp.ge.s32.totalorder %s33, 1
      %s35 = scalar_select %p34, 0, %s33
      %s36 = sadd.s32 1, %s20
      %s37 = scalar_select %p34, %s36, %s20
      %p38 = scmp.ge.s32.totalorder %s37, 2
      %s39 = scalar_select %p38, 0, %s37
      %s40 = ssub.s32 %s20, %s39
      %s41 = ssub.s32 %s21, %s35
      %s42 = sor.u32 %s40, %s41
      %p43 = scmp.eq.s32.totalorder %s42, 0
      %s45 = sadd.s32 %s44, 1
      %s46 = scalar_select %p43, %s44, %s45
      %p49 = pneg %p43
      %p50 = scmp.eq.s32.totalorder %s13, 1
      %p51 = por %p49, %p50
      %p52 = scmp.ne.s32.totalorder %s44, %s47
      %p53 = scmp.eq.s32.totalorder %s13, 0
      %p54 = por %p52, %p53
      %p55 = scmp.ne.s32.totalorder %s44, %s47
      %p56 = scmp.eq.s32.totalorder %s18, 1
      %p57 = por %p55, %p56
      %p58 = scmp.ne.s32.totalorder %s47, %s48
      %p59 = scmp.eq.s32.totalorder %s18, 0
      %p60 = por %p58, %p59
      %p61 = scmp.ne.s32.totalorder %s47, %s48
      %p62 = scmp.eq.s32.totalorder %s19, 1
      %p63 = por %p61, %p62
      %p65 = scmp.ne.s32.totalorder %s48, %s64
      %p66 = scmp.eq.s32.totalorder %s19, 0
      %p67 = por %p65, %p66
      %s68 = ssub.s32 %s20, %s39
      %s69 = ssub.s32 %s22, %s31
      %s70 = sor.u32 %s68, %s69
      %p71 = scmp.eq.s32.totalorder %s70, 0
      %s73 = sadd.s32 %s72, 1
      %s74 = scalar_select %p71, %s72, %s73
      %p77 = pneg %p71
      %p78 = scmp.eq.s32.totalorder %s13, 1
      %p79 = por %p77, %p78
      %p80 = scmp.ne.s32.totalorder %s72, %s75
      %p81 = scmp.eq.s32.totalorder %s13, 0
      %p82 = por %p80, %p81
      %p83 = scmp.ne.s32.totalorder %s72, %s75
      %p84 = scmp.eq.s32.totalorder %s18, 1
      %p85 = por %p83, %p84
      %p86 = scmp.ne.s32.totalorder %s75, %s76
      %p87 = scmp.eq.s32.totalorder %s18, 0
      %p88 = por %p86, %p87
      %p89 = scmp.ne.s32.totalorder %s75, %s76
      %p90 = scmp.eq.s32.totalorder %s19, 1
      %p91 = por %p89, %p90
      %p93 = scmp.ne.s32.totalorder %s76, %s92
      %p94 = scmp.eq.s32.totalorder %s19, 0
      %p95 = por %p93, %p94
      %s96 = ssub.s32 %s20, %s39
      %s97 = ssub.s32 %s21, %s35
      %s98 = sor.u32 %s96, %s97
      %p99 = scmp.eq.s32.totalorder %s98, 0
      %s101 = sadd.s32 %s100, 1
      %s102 = scalar_select %p99, %s100, %s101
      %p105 = pneg %p99
      %p106 = scmp.eq.s32.totalorder %s13, 1
      %p107 = por %p105, %p106
      %p108 = scmp.ne.s32.totalorder %s100, %s103
      %p109 = scmp.eq.s32.totalorder %s13, 0
      %p110 = por %p108, %p109
      %p111 = scmp.ne.s32.totalorder %s100, %s103
      %p112 = scmp.eq.s32.totalorder %s18, 1
      %p113 = por %p111, %p112
      %p114 = scmp.ne.s32.totalorder %s103, %s104
      %p115 = scmp.eq.s32.totalorder %s18, 0
      %p116 = por %p114, %p115
      %p117 = scmp.ne.s32.totalorder %s103, %s104
      %p118 = scmp.eq.s32.totalorder %s19, 1
      %p119 = por %p117, %p118
      %p121 = scmp.ne.s32.totalorder %s104, %s120
      %p122 = scmp.eq.s32.totalorder %s19, 0
      %p123 = por %p121, %p122
      %s124 = ssub.s32 %s20, %s39
      %s125 = ssub.s32 %s22, %s31
      %s126 = sor.u32 %s124, %s125
      %p127 = scmp.eq.s32.totalorder %s126, 0
      %s129 = sadd.s32 %s128, 1
      %s130 = scalar_select %p127, %s128, %s129
      %p133 = pneg %p127
      %p134 = scmp.eq.s32.totalorder %s13, 1
      %p135 = por %p133, %p134
      %p136 = scmp.ne.s32.totalorder %s128, %s131
      %p137 = scmp.eq.s32.totalorder %s13, 0
      %p138 = por %p136, %p137
      %p139 = scmp.ne.s32.totalorder %s128, %s131
      %p140 = scmp.eq.s32.totalorder %s18, 1
      %p141 = por %p139, %p140
      %p142 = scmp.ne.s32.totalorder %s131, %s132
      %p143 = scmp.eq.s32.totalorder %s18, 0
      %p144 = por %p142, %p143
      %p145 = scmp.ne.s32.totalorder %s131, %s132
      %p146 = scmp.eq.s32.totalorder %s19, 1
      %p147 = por %p145, %p146
      %p149 = scmp.ne.s32.totalorder %s132, %s148
      %p150 = scmp.eq.s32.totalorder %s19, 0
      %p151 = por %p149, %p150
      %s152 = ssub.s32 %s20, %s39
      %s153 = ssub.s32 %s21, %s35
      %s154 = sor.u32 %s152, %s153
      %s155 = ssub.s32 %s22, %s31
      %s156 = sor.u32 %s154, %s155
      %p157 = scmp.eq.s32.totalorder %s156, 0
      %s159 = sadd.s32 %s158, 1
      %s160 = scalar_select %p157, %s158, %s159
      %p163 = pneg %p157
      %p164 = scmp.eq.s32.totalorder %s13, 1
      %p165 = por %p163, %p164
      %p166 = scmp.ne.s32.totalorder %s158, %s161
      %p167 = scmp.eq.s32.totalorder %s13, 0
      %p168 = por %p166, %p167
      %p169 = scmp.ne.s32.totalorder %s158, %s161
      %p170 = scmp.eq.s32.totalorder %s18, 1
      %p171 = por %p169, %p170
      %p172 = scmp.ne.s32.totalorder %s161, %s162
      %p173 = scmp.eq.s32.totalorder %s18, 0
      %p174 = por %p172, %p173
      %p175 = scmp.ne.s32.totalorder %s161, %s162
      %p176 = scmp.eq.s32.totalorder %s19, 1
      %p177 = por %p175, %p176
      %p179 = scmp.ne.s32.totalorder %s162, %s178
      %p180 = scmp.eq.s32.totalorder %s19, 0
      %p181 = por %p179, %p180
      %p182 = scmp.le.s32.totalorder 1, %s13
      %p183 = scmp.lt.s32.totalorder %s13, 3
      %p184 = pnand %p182, %p183
      %p185 = pneg %p184
      // Predicated region
      $region9: #{matcher_cost_blocks.1} parent=5 // pred_check
        _
      $region10: #{matcher_cost_blocks.1} parent=5 // pred_check_branch
        %187 = sbr.rel (%p184) target = $region12
      $region11: #{matcher_cost_blocks.1} parent=5 // pred_region
        %s188 = ssub.s32 %s13, 1
      $region12: #{matcher_cost_blocks.1} parent=5 // pred_fallthru
        _
      %p189 = scmp.lt.s32.totalorder %s13, 2
      // Predicated region
      $region13: #{matcher_cost_blocks.1} parent=5 // pred_check
        %p190 = pneg %p189
      $region14: #{matcher_cost_blocks.1} parent=5 // pred_check_branch
        %192 = sbr.rel (%p190) target = $region16
      $region15: #{matcher_cost_blocks.1} parent=5 // pred_region
        // Predicated region
        $region17: #{matcher_cost_blocks.1} parent=15 // pred_check
          %p193 = pneg %p54
        $region18: #{matcher_cost_blocks.1} parent=15 // pred_check_branch
          %195 = sbr.rel (%p193) target = $region20
        $region19: #{matcher_cost_blocks.1} parent=15 // pred_region
          %p196 = scmp.lt.s32.totalorder %s20, 1
          %s197 = scalar_select %p196, %s20, 1
          %p198 = scmp.lt.s32.totalorder %s21, 0
          %s199 = scalar_select %p198, %s21, 0
          %s200 = sadd.s32 %s199, %s197
          %s201 = smul.addr %s200, 8
          %s202 = scalar_lea.vmem %s0, %s201
        $region20: #{matcher_cost_blocks.1} parent=15 // pred_fallthru
          _
        // Predicated region
        $region21: #{matcher_cost_blocks.1} parent=15 // pred_check
          %p203 = pneg %p82
        $region22: #{matcher_cost_blocks.1} parent=15 // pred_check_branch
          %205 = sbr.rel (%p203) target = $region24
        $region23: #{matcher_cost_blocks.1} parent=15 // pred_region
          %p206 = scmp.lt.s32.totalorder %s20, 1
          %s207 = scalar_select %p206, %s20, 1
          %p208 = scmp.lt.s32.totalorder %s22, 0
          %s209 = scalar_select %p208, %s22, 0
          %s210 = sadd.s32 %s209, %s207
          %s211 = smul.addr %s210, 4
          %s212 = scalar_lea.vmem %s1, %s211
        $region24: #{matcher_cost_blocks.1} parent=15 // pred_fallthru
          _
        // Predicated region
        $region25: #{matcher_cost_blocks.1} parent=15 // pred_check
          %p213 = pneg %p110
        $region26: #{matcher_cost_blocks.1} parent=15 // pred_check_branch
          %215 = sbr.rel (%p213) target = $region28
        $region27: #{matcher_cost_blocks.1} parent=15 // pred_region
          %p216 = scmp.lt.s32.totalorder %s20, 1
          %s217 = scalar_select %p216, %s20, 1
          %p218 = scmp.lt.s32.totalorder %s21, 0
          %s219 = scalar_select %p218, %s21, 0
          %s220 = sadd.s32 %s219, %s217
          %s221 = smul.addr %s220, 8
          %s222 = scalar_lea.vmem %s2, %s221
        $region28: #{matcher_cost_blocks.1} parent=15 // pred_fallthru
          _
        // Predicated region
        $region29: #{matcher_cost_blocks.1} parent=15 // pred_check
          %p223 = pneg %p138
        $region30: #{matcher_cost_blocks.1} parent=15 // pred_check_branch
          %225 = sbr.rel (%p223) target = $region32
        $region31: #{matcher_cost_blocks.1} parent=15 // pred_region
          %p226 = scmp.lt.s32.totalorder %s20, 1
          %s227 = scalar_select %p226, %s20, 1
          %p228 = scmp.lt.s32.totalorder %s22, 0
          %s229 = scalar_select %p228, %s22, 0
          %s230 = sadd.s32 %s229, %s227
          %s231 = scalar_lea.vmem %s3, %s230
        $region32: #{matcher_cost_blocks.1} parent=15 // pred_fallthru
          _
      $region16: #{matcher_cost_blocks.1} parent=5 // pred_fallthru
        _
      %p232 = scmp.le.s32.totalorder 1, %s13
      %p233 = scmp.lt.s32.totalorder %s13, 3
      %p234 = pnand %p232, %p233
      %p235 = pneg %p234
      // Predicated region
      $region33: #{matcher_cost_blocks.1} parent=5 // pred_check
        _
      $region34: #{matcher_cost_blocks.1} parent=5 // pred_check_branch
        %237 = sbr.rel (%p234) target = $region36
      $region35: #{matcher_cost_blocks.1} parent=5 // pred_region
        %s238 = ssub.s32 %s13, 1
        %p239 = scmp.lt.s32.totalorder %s23, 1
        %s240 = scalar_select %p239, %s23, 1
        %p241 = scmp.lt.s32.totalorder %s24, 0
        %s242 = scalar_select %p241, %s24, 0
        %s243 = sadd.s32 %s242, %s240
        %s244 = smul.addr %s243, 8
        %s245 = scalar_lea.vmem %s0, %s244
        %p246 = pneg %p60
        %p247 = pneg %p57
        %p248 = scmp.lt.s32.totalorder %s23, 1
        %s249 = scalar_select %p248, %s23, 1
        %p250 = scmp.lt.s32.totalorder %s25, 0
        %s251 = scalar_select %p250, %s25, 0
        %s252 = sadd.s32 %s251, %s249
        %s253 = smul.addr %s252, 4
        %s254 = scalar_lea.vmem %s1, %s253
        %p255 = pneg %p88
        %p256 = pneg %p85
        %p257 = scmp.lt.s32.totalorder %s23, 1
        %s258 = scalar_select %p257, %s23, 1
        %p259 = scmp.lt.s32.totalorder %s24, 0
        %s260 = scalar_select %p259, %s24, 0
        %s261 = sadd.s32 %s260, %s258
        %s262 = smul.addr %s261, 8
        %s263 = scalar_lea.vmem %s2, %s262
        %p264 = pneg %p116
        %p265 = pneg %p113
        %p266 = scmp.lt.s32.totalorder %s23, 1
        %s267 = scalar_select %p266, %s23, 1
        %p268 = scmp.lt.s32.totalorder %s25, 0
        %s269 = scalar_select %p268, %s25, 0
        %s270 = sadd.s32 %s269, %s267
        %s271 = scalar_lea.vmem %s3, %s270
        %p272 = pneg %p144
        %p273 = pneg %p141
        %p274 = pneg %p174
        %p275 = pneg %p171
        %s276 = sand.u32 %s161, 1
        %s277 = scalar_lea.sflag [#allocation3], %s276
        %s278 = sand.u32 %s161, 1
        %s279 = smul.addr %s278, 8
        %s280 = scalar_lea.vmem [#allocation2], %s279
        %p281 = scmp.lt.s32.totalorder %s23, 1
        %s282 = scalar_select %p281, %s23, 1
        %p283 = scmp.lt.s32.totalorder %s24, 0
        %s284 = scalar_select %p283, %s24, 0
        %s285 = sadd.s32 %s284, %s282
        %s286 = smul.addr %s285, 8
        %s287 = scalar_lea.vmem %s0, %s286
        %p288 = scmp.lt.s32.totalorder %s23, 1
        %s289 = scalar_select %p288, %s23, 1
        %p290 = scmp.lt.s32.totalorder %s25, 0
        %s291 = scalar_select %p290, %s25, 0
        %s292 = sadd.s32 %s291, %s289
        %s293 = smul.addr %s292, 4
        %s294 = scalar_lea.vmem %s1, %s293
        %p295 = scmp.lt.s32.totalorder %s23, 1
        %s296 = scalar_select %p295, %s23, 1
        %p297 = scmp.lt.s32.totalorder %s24, 0
        %s298 = scalar_select %p297, %s24, 0
        %s299 = sadd.s32 %s298, %s296
        %s300 = smul.addr %s299, 8
        %s301 = scalar_lea.vmem %s2, %s300
        %p302 = scmp.lt.s32.totalorder %s23, 1
        %s303 = scalar_select %p302, %s23, 1
        %p304 = scmp.lt.s32.totalorder %s25, 0
        %s305 = scalar_select %p304, %s25, 0
        %s306 = sadd.s32 %s305, %s303
        %s307 = scalar_lea.vmem %s3, %s306
        %v308 = vld [vmem:[%s287] sm:$0xff]
        %v309 = vld [vmem:[%s294] sm:$0x7]
        %v310 = vld [vmem:[%s301] sm:$0xff]
        %v311 = vld [vmem:[%s307] sm:$0x1]
        %313 = vset.pattern.permute.xlu0 0
        %314 = vperm.xlu0 %313, %v308
        %v315 = vpop.permute.xlu0 %314
        %v317 = vlaneseq
        %v318 = vshrl.u32 %v317, 7
        %v319 = vsub.s32 0, %v318
        %v320 = vrot.slane %v309, %v319
        %v321 = vsub.f32 %v315, %v320
        %v322 = vand.u32 2147483647, %v321
        %323 = vset.pattern.permute.xlu0 1
        %324 = vperm.xlu0 %323, %v308
        %v325 = vpop.permute.xlu0 %324
        %v327 = vlaneseq
        %v328 = vshrl.u32 %v327, 7
        %v329 = vsub.s32 1, %v328
        %v330 = vrot.slane %v309, %v329
        %v331 = vsub.f32 %v325, %v330
        %v332 = vand.u32 2147483647, %v331
        %v333 = vadd.f32 %v322, %v332
        %334 = vset.pattern.permute.xlu0 2
        %335 = vperm.xlu0 %334, %v308
        %v336 = vpop.permute.xlu0 %335
        %v338 = vlaneseq
        %v339 = vshrl.u32 %v338, 7
        %v340 = vsub.s32 2, %v339
        %v341 = vrot.slane %v309, %v340
        %v342 = vsub.f32 %v336, %v341
        %v343 = vand.u32 2147483647, %v342
        %v344 = vadd.f32 %v333, %v343
        %vm345 = vcmask 15360
        %v346 = vsel %vm345, %v310, -inf
        %347 = vmax.xlane.f32.xlu0 %v346
        %v348 = vpop.xlane.xlu0 %347
        %v349 = vsub.f32 %v310, %v348
        %v350 = vmul.f32 %v349, 1.442695
        %v351 = vpow.pop %v350
        %v352 = vsel %vm345, %v351, 0.0
        %353 = vadd.xlane.f32.xlu0 %v352
        %v354 = vpop.xlane.xlu0 %353
        %v355 = vrcp.pop %v354
        %v356 = vmul.f32 %v351, %v355
        %vm357 = vcmp.eq.s32.totalorder %v311, 0
        %v358 = vsel %vm357, 1, 0
        %v359 = vcvt.s32.f32 %v358
        %361 = vset.pattern.permute.xlu0 0
        %362 = vperm.xlu0 %361, %v356
        %v363 = vpop.permute.xlu0 %362
        %v366 = vlaneseq
        %v367 = vshrl.u32 %v366, 7
        %v368 = vsub.s32 0, %v367
        %v369 = vrot.slane %v359, %v368
        %v371 = vmul.f32 %v363, %v369
        %vm372 = vcmp.eq.s32.totalorder %v311, 1
        %v373 = vsel %vm372, 1, 0
        %v374 = vcvt.s32.f32 %v373
        %375 = vset.pattern.permute.xlu0 1
        %376 = vperm.xlu0 %375, %v356
        %v377 = vpop.permute.xlu0 %376
        %v380 = vlaneseq
        %v381 = vshrl.u32 %v380, 7
        %v382 = vsub.s32 0, %v381
        %v383 = vrot.slane %v374, %v382
        %v385 = vmul.f32 %v377, %v383
        %v386 = vadd.f32 %v371, %v385
        %v387 = vmul.f32 %v344, 5.0
        %v388 = vmul.f32 %v386, 3.0
        %v389 = vsub.f32 %v387, %v388
        %390 = vst [vmem:[%s280] sm:$0xff] %v389
        %s391 = sand.u32 %s161, 1
        %s392 = scalar_lea.sflag [#allocation3], %s391
        %s393 = sand.u32 %s161, 1
        %s394 = smul.addr %s393, 8
        %s395 = scalar_lea.vmem [#allocation2], %s394
        // Predicated region
        $region37: #{matcher_cost_blocks.1} parent=35 // pred_check
          %p396 = pneg %p171
        $region38: #{matcher_cost_blocks.1} parent=35 // pred_check_branch
          %398 = sbr.rel (%p396) target = $region40
        $region39: #{matcher_cost_blocks.1} parent=35 // pred_region
          %s400 = ssub.s32 128, 128
          %401 = vsyncadd %s392, %s400
          %s402 = sadd.s32 %s25, %s24
          %s403 = sadd.s32 %s402, %s23
          %s404 = smul.addr %s403, 128
          %s405 = scalar_lea.hbm %s4, %s404
          %s407 = sshll.u32 %s395, 4
          %s408 = int_to_ptr.vmem [resolvable:$true] %s407
          %410 = dma.vmem_to_hbm [thread:$0]  %s408, 128, %s405, %s392
        $region40: #{matcher_cost_blocks.1} parent=35 // pred_fallthru
          _
      $region36: #{matcher_cost_blocks.1} parent=5 // pred_fallthru
        _
      %p411 = scmp.le.s32.totalorder 2, %s13
      // Predicated region
      $region41: #{matcher_cost_blocks.1} parent=5 // pred_check
        %p412 = pneg %p411
      $region42: #{matcher_cost_blocks.1} parent=5 // pred_check_branch
        %414 = sbr.rel (%p412) target = $region44
      $region43: #{matcher_cost_blocks.1} parent=5 // pred_region
        %s415 = ssub.s32 %s13, 2
        // Predicated region
        $region45: #{matcher_cost_blocks.1} parent=43 // pred_check
          %p416 = pneg %p177
        $region46: #{matcher_cost_blocks.1} parent=43 // pred_check_branch
          %418 = sbr.rel (%p416) target = $region48
        $region47: #{matcher_cost_blocks.1} parent=43 // pred_region
          %s419 = sand.u32 %s162, 1
          %s420 = scalar_lea.sflag [#allocation3], %s419
          %s421 = sand.u32 %s162, 1
          %s422 = smul.addr %s421, 8
          %s423 = scalar_lea.vmem [#allocation2], %s422
          %424 = dma.done %s420, 128
        $region48: #{matcher_cost_blocks.1} parent=43 // pred_fallthru
          _
      $region44: #{matcher_cost_blocks.1} parent=5 // pred_fallthru
        _
    $region6: #{matcher_cost_blocks.1} parent=1 // loop_footer
      %s17 = sadd.s32 1, %s13
    $region7: #{matcher_cost_blocks.1} parent=1 // loop_footer_branch
      %12 = sbr.rel target = $region3
    $region8: #{matcher_cost_blocks.1} parent=1 // loop_exit
      _
    %425 = vsyncpa [#allocation3], 1
    %s426 = scalar_lea.sflag [#allocation3], 1
    %427 = vsyncpa %s426, 1

</llo_original>
